<compile_context>
chip_gen: v5e
topology: v5e:2x2
jax: 0.10.0
libtpu: 0.0.40
codegen_flags: <defaults>
</compile_context>

<pallas_src>
import jax
import jax.numpy as jnp
from jax.experimental import pallas as pl
from jax.experimental.pallas import tpu as pltpu


def _round_up(x: int, m: int) -> int:
    return (x + m - 1) // m * m


def highway_kernel(x_ref, w_ref, b_ref, o_ref):
    """One (TILE_N, Ew) row tile: fused proj+gate matmul, ReLU/sigmoid, skip."""
    x = x_ref[...]                                    # (TILE_N, Ew) f32
    w = w_ref[...]                                    # (Ew, 2*Ew)  bf16, resident
    b = b_ref[...]                                    # (1, 2*Ew)   f32

    # Single fused MXU matmul for proj || gate, f32 accumulation.
    fused = jnp.dot(x.astype(w.dtype), w, preferred_element_type=jnp.float32) + b

    ew = o_ref.shape[-1]                              # Ew (static, 128-multiple)
    proj = jnp.maximum(fused[:, :ew], 0.0)            # ReLU    (VPU)
    gate = jax.nn.sigmoid(fused[:, ew:])              # sigmoid (EUP)

    # proj*gate + (1-gate)*x  ==  x + gate*(proj - x)   (one fewer VPU op)
    o_ref[...] = (x + gate * (proj - x)).astype(o_ref.dtype)


def prepare_highway_params(w_proj, b_proj, w_gate, b_gate):
    """One-time prep: transpose (out,in)->(in,out), fuse proj||gate, lay out.

    Layout (done once, outside the hot path):
      * E % 128 == 0        -> fused weight (E, 2E), no padding anywhere.
      * E < 128, 128 % E==0 -> block-diagonal packing, p = 128 // E rows per
                               lane-row; activation traffic not inflated.
      * otherwise           -> zero-pad E up to a multiple of 128 (cols only).
    """
    e = int(w_proj.shape[0])
    if e % 128 == 0:
        pack, e_w = 1, e
    elif e < 128 and 128 % e == 0:
        pack, e_w = 128 // e, 128
    else:
        pack, e_w = 1, _round_up(e, 128)

    wf = jnp.zeros((e_w, 2 * e_w), jnp.float32)
    bf = jnp.zeros((1, 2 * e_w), jnp.float32)
    for blk in range(pack):
        lo = blk * e
        wf = wf.at[lo:lo + e, lo:lo + e].set(w_proj.T)
        wf = wf.at[lo:lo + e, e_w + lo:e_w + lo + e].set(w_gate.T)
        bf = bf.at[0, lo:lo + e].set(b_proj)
        bf = bf.at[0, e_w + lo:e_w + lo + e].set(b_gate)
    return {"w": wf.astype(jnp.bfloat16), "b": bf, "e": e, "pack": pack, "e_w": e_w}


def _vmem_budget_bytes() -> int:
    """Generation-aware VMEM budget: ~3/4 of physical, capped at 96 MiB.

    v7x: 64 MiB VMEM -> ~48 MiB budget; v5e/v6e: 128 MiB -> 96 MiB budget.
    Falls back to a conservative 48 MiB if the query is unavailable.
    """
    cap = 64 * 1024 * 1024
    try:
        cap = int(pltpu.get_tpu_info().vmem_capacity_bytes)
    except Exception:
        pass
    return min(cap * 3 // 4, 96 * 1024 * 1024)


def _pick_tile_n(n_rows: int, e_w: int, budget_bytes: int) -> int:
    """Largest 8-multiple row tile (<= 1024) whose working set fits the budget."""
    tile = min(1024, _round_up(max(n_rows, 1), 8))
    w_bytes = e_w * (2 * e_w) * 2          # fused bf16 weight, single-buffered
    b_bytes = 2 * e_w * 4                  # bias (tiny), single-buffered
    while True:
        est = (2 * tile * e_w * 4          # x tile   f32, double-buffered
               + 2 * tile * e_w * 4        # out tile f32, double-buffered
               + tile * e_w * 2            # bf16 cast of the x tile
               + tile * 2 * e_w * 4        # fused matmul intermediate, f32
               + w_bytes + b_bytes)
        if est <= budget_bytes or tile <= 8:
            return tile
        tile = max(8, (tile // 2) // 8 * 8)


def highway(x, params):
    """Highway forward. x: (..., E) float32. params: prepare_highway_params()."""
    wf, bf = params["w"], params["b"]
    e, pack, e_w = params["e"], params["pack"], params["e_w"]

    lead_shape = x.shape[:-1]
    x2 = x.reshape(-1, e).astype(jnp.float32)
    n = x2.shape[0]

    # Lay the activation out lane-dense without any N padding.
    pad_rows = 0
    if pack > 1:
        pad_rows = (-n) % pack
        if pad_rows:                       # at most pack-1 rows, rare & tiny
            x2 = jnp.concatenate([x2, jnp.zeros((pad_rows, e), x2.dtype)], axis=0)
        xw = x2.reshape(-1, e_w)           # free reshape: (N/p, 128)
    elif e_w == e:
        xw = x2                            # fast path: zero extra copies
    else:
        xw = jnp.zeros((n, e_w), x2.dtype).at[:, :e].set(x2)   # column pad only

    n_w = xw.shape[0]
    budget = _vmem_budget_bytes()
    tile_n = _pick_tile_n(n_w, e_w, budget)

    const_map = lambda i: (0, 0)           # grid-invariant operands
    out = pl.pallas_call(
        highway_kernel,
        out_shape=jax.ShapeDtypeStruct((n_w, e_w), jnp.float32),
        grid_spec=pltpu.PrefetchScalarGridSpec(
            num_scalar_prefetch=0,
            # Rows are independent: the tail tile's out-of-bounds rows are
            # masked on writeback, so no N padding is needed.
            grid=(pl.cdiv(n_w, tile_n),),
            in_specs=[
                pl.BlockSpec((tile_n, e_w), lambda i: (i, 0)),          # x tiles
                pl.BlockSpec((e_w, 2 * e_w), const_map,
                             pipeline_mode=pl.Buffered(1)),             # fused W
                pl.BlockSpec((1, 2 * e_w), const_map,
                             pipeline_mode=pl.Buffered(1)),             # fused b
            ],
            out_specs=pl.BlockSpec((tile_n, e_w), lambda i: (i, 0)),
        ),
        compiler_params=pltpu.CompilerParams(
            dimension_semantics=("parallel",),   # shards rows across v7x's 2 TCs
            vmem_limit_bytes=budget,
        ),
    )(xw, wf, bf)

    # Undo packing / padding (reshape is free; slices only exist when padded).
    if pack > 1:
        out = out.reshape(-1, e)
        if pad_rows:
            out = out[:n]
    elif e_w != e:
        out = out[:, :e]
    return out.reshape(*lead_shape, e)


if __name__ == "__main__":
    embed_size = 32
    batch = 8

    key = jax.random.PRNGKey(0)
    kx, kwp, kbp, kwg, kbg = jax.random.split(key, 5)

    # PyTorch nn.Linear layout: weight (out_features, in_features), bias (out,).
    x = jax.random.normal(kx, (batch, embed_size), dtype=jnp.float32)
    w_proj = jax.random.normal(kwp, (embed_size, embed_size), jnp.float32) * 0.1
    b_proj = jax.random.normal(kbp, (embed_size,), jnp.float32) * 0.1
    w_gate = jax.random.normal(kwg, (embed_size, embed_size), jnp.float32) * 0.1
    b_gate = jax.random.normal(kbg, (embed_size,), jnp.float32) * 0.1

    params = prepare_highway_params(w_proj, b_proj, w_gate, b_gate)
    out = highway(x, params)
    jax.block_until_ready(out)

    # Pure-JAX f32 reference (kernel uses bf16 matmul operands -> loosened tol).
    proj_ref = jnp.maximum(x @ w_proj.T + b_proj, 0.0)
    gate_ref = jax.nn.sigmoid(x @ w_gate.T + b_gate)
    ref = proj_ref * gate_ref + (1.0 - gate_ref) * x

    assert out.shape == ref.shape, f"shape mismatch: {out.shape} vs {ref.shape}"
    max_err = float(jnp.max(jnp.abs(out - ref)))
    assert jnp.allclose(out, ref, atol=3e-2, rtol=3e-2), (
        f"mismatch vs reference, max abs err = {max_err}")

    print("KERNEL_OK")
</pallas_src>

<mosaic_0001>
module attributes {stable_mosaic.version = 11 : i64} {
  func.func @highway_kernel(%arg0: i32, %arg1: memref<8x128xf32, #tpu.memory_space<vmem>>, %arg2: memref<128x256xbf16, #tpu.memory_space<vmem>>, %arg3: memref<1x256xf32, #tpu.memory_space<vmem>>, %arg4: memref<8x128xf32, #tpu.memory_space<vmem>>) attributes {dimension_semantics = [#tpu.dimension_semantics<parallel>], iteration_bounds = array<i64: 1>, scalar_prefetch = 0 : i64, scratch_operands = 0 : i64, tpu.core_type = #tpu.core_type<tc>, window_params = [{transform_indices = @transform_0, window_bounds = array<i64: 8, 128>}, {pipeline_mode = #tpu.pipeline_mode<synchronous>, transform_indices = @transform_1, window_bounds = array<i64: 128, 256>}, {pipeline_mode = #tpu.pipeline_mode<synchronous>, transform_indices = @transform_2, window_bounds = array<i64: 1, 256>}, {transform_indices = @transform_3, window_bounds = array<i64: 8, 128>}]} {
    %c0 = arith.constant 0 : index
    %c0_0 = arith.constant 0 : index
    %0 = vector.load %arg1[%c0, %c0_0] : memref<8x128xf32, #tpu.memory_space<vmem>>, vector<8x128xf32>
    %c0_1 = arith.constant 0 : index
    %c0_2 = arith.constant 0 : index
    %1 = vector.load %arg2[%c0_1, %c0_2] : memref<128x256xbf16, #tpu.memory_space<vmem>>, vector<128x256xbf16>
    %c0_3 = arith.constant 0 : index
    %c0_4 = arith.constant 0 : index
    %2 = vector.load %arg3[%c0_3, %c0_4] : memref<1x256xf32, #tpu.memory_space<vmem>>, vector<1x256xf32>
    %3 = arith.truncf %0 : vector<8x128xf32> to vector<8x128xbf16>
    %cst = arith.constant dense<0.000000e+00> : vector<8x256xf32>
    %4 = tpu.matmul %3, %1, %cst {dimension_numbers = #tpu.dot_dimension_numbers<[1], [0], [0], [1], [0, 0, 1, 1], [], []>} : vector<8x128xbf16>, vector<128x256xbf16>, vector<8x256xf32> -> vector<8x256xf32>
    %5 = vector.broadcast %2 : vector<1x256xf32> to vector<8x256xf32>
    %6 = arith.addf %4, %5 : vector<8x256xf32>
    %7 = vector.extract_strided_slice %6 {offsets = [0, 0], sizes = [8, 128], strides = [1, 1]} : vector<8x256xf32> to vector<8x128xf32>
    %cst_5 = arith.constant 0.000000e+00 : f32
    %8 = vector.broadcast %cst_5 : f32 to vector<8x128xf32>
    %9 = arith.maximumf %7, %8 : vector<8x128xf32>
    %10 = vector.extract_strided_slice %6 {offsets = [0, 128], sizes = [8, 128], strides = [1, 1]} : vector<8x256xf32> to vector<8x128xf32>
    %11 = arith.negf %10 : vector<8x128xf32>
    %12 = math.exp %11 : vector<8x128xf32>
    %cst_6 = arith.constant 1.000000e+00 : f32
    %13 = vector.broadcast %cst_6 : f32 to vector<8x128xf32>
    %14 = arith.addf %13, %12 : vector<8x128xf32>
    %15 = arith.divf %13, %14 : vector<8x128xf32>
    %16 = arith.subf %9, %0 : vector<8x128xf32>
    %17 = arith.mulf %15, %16 : vector<8x128xf32>
    %18 = arith.addf %0, %17 : vector<8x128xf32>
    %c0_7 = arith.constant 0 : index
    %c0_8 = arith.constant 0 : index
    %19 = vector.load %arg4[%c0_7, %c0_8] : memref<8x128xf32, #tpu.memory_space<vmem>>, vector<8x128xf32>
    tpu.vector_store %arg4[%c0_7, %c0_8], %18 {strides = array<i32>} : memref<8x128xf32, #tpu.memory_space<vmem>>, vector<8x128xf32>,
    return
  }
  func.func @transform_0(%arg0: i32) -> (i32, i32) {
    %c0_i32 = arith.constant 0 : i32
    %c0_i32_0 = arith.constant 0 : i32
    return %arg0, %c0_i32 : i32, i32
  }
  func.func @transform_1(%arg0: i32) -> (i32, i32) {
    %c0_i32 = arith.constant 0 : i32
    %c0_i32_0 = arith.constant 0 : i32
    %c0_i32_1 = arith.constant 0 : i32
    return %c0_i32, %c0_i32_0 : i32, i32
  }
  func.func @transform_2(%arg0: i32) -> (i32, i32) {
    %c0_i32 = arith.constant 0 : i32
    %c0_i32_0 = arith.constant 0 : i32
    %c0_i32_1 = arith.constant 0 : i32
    return %c0_i32, %c0_i32_0 : i32, i32
  }
  func.func @transform_3(%arg0: i32) -> (i32, i32) {
    %c0_i32 = arith.constant 0 : i32
    %c0_i32_0 = arith.constant 0 : i32
    return %arg0, %c0_i32 : i32, i32
  }
}

</mosaic_0001>

<llo_original>
// kernel: tpu_custom_call.1
$region0: #{tpu_custom_call.1}
  #allocation0 [shape = 'u32[]', space=smem, size = 0x4, offset = 0x4, fixed_abs, tag = 'smem constant byte address 0x4 - core index']
  #allocation1 [shape = 'u32[72,128]{1,0:T(1,128)}', space=vmem, size = 0x9000, scoped, tag = 'internal scratch']
  %s0 = inlined_call_operand.hbm [shape: f32[2,128], index: 0, kind: input, shape index: {}]
  %s1 = inlined_call_operand.hbm [shape: bf16[128,256], index: 1, kind: input, shape index: {}]
  %s2 = inlined_call_operand.hbm [shape: f32[1,256], index: 2, kind: input, shape index: {}]
  %s3 = inlined_call_operand.hbm [shape: f32[2,128], index: 3, kind: output, shape index: {}]
  %s4 = sld [smem:[#allocation0]]
  $region34: #{tpu_custom_call.1} parent=0
    _
  %s6 = ssub.s32 1, %s4
  %s7 = scalar_select 0, %s6, %s4
  $region1: #{tpu_custom_call.1} parent=0
    #allocation2 [shape = 'u8[4096]{0}', space=vmem, size = 0x1000, scoped, tag = 'input window, operand 0, single buffered']
    #allocation3 [shape = 's32[1]{0}', space=sflag, size = 0x4, scoped, tag = 'scoped memory for tpu_custom_call.1']
    #allocation4 [shape = 's32[1]{0}', space=sflag, size = 0x4, scoped, tag = 'scoped memory for tpu_custom_call.1']
    #allocation5 [shape = 'u8[65536]{0}', space=vmem, size = 0x10000, scoped, tag = 'input window, operand 1, single buffered']
    #allocation6 [shape = 's32[1]{0}', space=sflag, size = 0x4, scoped, tag = 'scoped memory for tpu_custom_call.1']
    #allocation7 [shape = 'u8[1024]{0}', space=vmem, size = 0x400, scoped, tag = 'input window, operand 2, single buffered']
    #allocation8 [shape = 'u8[4096]{0}', space=vmem, size = 0x1000, scoped, tag = 'output window, operand 0, single buffered']
    %8 = vsyncpa [#allocation3], 0
    %9 = vsyncpa [#allocation6], 0
    %10 = vsyncpa [#allocation4], 0
    // Predicated region
    $region2: #{tpu_custom_call.1} parent=1 // pred_check
      _
    $region3: #{tpu_custom_call.1} parent=1 // pred_check_branch
      %12 = sbr.rel (0) target = $region5
    $region4: #{tpu_custom_call.1} parent=1 // pred_region
      %14 = vsyncadd [#allocation3], 96
      %s15 = sshll.u32 %s0, 4
      %s16 = int_to_ptr.hbm [resolvable:$true] %s15
      %s17 = sshll.u32 [#allocation2], 4
      %s18 = int_to_ptr.vmem [resolvable:$true] %s17
      %23 = dma.hbm_to_vmem [thread:$0]  %s16, 32, %s18, [#allocation3], 32, 32, 2
    $region5: #{tpu_custom_call.1} parent=1 // pred_fallthru
      _
    // Predicated region
    $region6: #{tpu_custom_call.1} parent=1 // pred_check
      _
    $region7: #{tpu_custom_call.1} parent=1 // pred_check_branch
      %25 = sbr.rel (0) target = $region9
    $region8: #{tpu_custom_call.1} parent=1 // pred_region
      %27 = vsyncadd [#allocation6], 0
      %s28 = sshll.u32 %s1, 4
      %s29 = int_to_ptr.hbm [resolvable:$true] %s28
      %s30 = sshll.u32 [#allocation5], 4
      %s31 = int_to_ptr.vmem [resolvable:$true] %s30
      %36 = dma.hbm_to_vmem [thread:$0]  %s29, 2048, %s31, [#allocation6], 128, 128, 8
    $region9: #{tpu_custom_call.1} parent=1 // pred_fallthru
      _
    // Predicated region
    $region10: #{tpu_custom_call.1} parent=1 // pred_check
      _
    $region11: #{tpu_custom_call.1} parent=1 // pred_check_branch
      %38 = sbr.rel (0) target = $region13
    $region12: #{tpu_custom_call.1} parent=1 // pred_region
      %40 = vsyncadd [#allocation6], 0
      %s42 = sshll.u32 %s2, 4
      %s43 = int_to_ptr.hbm [resolvable:$true] %s42
      %s44 = sshll.u32 [#allocation7], 4
      %s45 = int_to_ptr.vmem [resolvable:$true] %s44
      %47 = dma.hbm_to_vmem [thread:$0]  %s43, 32, %s45, [#allocation6]
    $region13: #{tpu_custom_call.1} parent=1 // pred_fallthru
      _
    // Predicated region
    $region14: #{tpu_custom_call.1} parent=1 // pred_check
      _
    $region15: #{tpu_custom_call.1} parent=1 // pred_check_branch
      %49 = sbr.rel (0) target = $region17
    $region16: #{tpu_custom_call.1} parent=1 // pred_region
      %51 = dma.done [#allocation3], 128
    $region17: #{tpu_custom_call.1} parent=1 // pred_fallthru
      _
    // Predicated region
    $region18: #{tpu_custom_call.1} parent=1 // pred_check
      _
    $region19: #{tpu_custom_call.1} parent=1 // pred_check_branch
      %53 = sbr.rel (0) target = $region21
    $region20: #{tpu_custom_call.1} parent=1 // pred_region
      %55 = dma.done [#allocation6], 2048
    $region21: #{tpu_custom_call.1} parent=1 // pred_fallthru
      _
    // Predicated region
    $region22: #{tpu_custom_call.1} parent=1 // pred_check
      _
    $region23: #{tpu_custom_call.1} parent=1 // pred_check_branch
      %57 = sbr.rel (0) target = $region25
    $region24: #{tpu_custom_call.1} parent=1 // pred_region
      %59 = dma.done [#allocation6], 32
    $region25: #{tpu_custom_call.1} parent=1 // pred_fallthru
      _
    %v60 = vld [vmem:[#allocation2] sm:$0xff]
    %v61 = vld [vmem:[#allocation5] sm:$0xff]
    %v62 = vld [vmem:[#allocation5 + $0x8] sm:$0xff]
    %v63 = vld [vmem:[#allocation5 + $0x10] sm:$0xff]
    %v64 = vld [vmem:[#allocation5 + $0x18] sm:$0xff]
    %v65 = vld [vmem:[#allocation5 + $0x20] sm:$0xff]
    %v66 = vld [vmem:[#allocation5 + $0x28] sm:$0xff]
    %v67 = vld [vmem:[#allocation5 + $0x30] sm:$0xff]
    %v68 = vld [vmem:[#allocation5 + $0x38] sm:$0xff]
    %v69 = vld [vmem:[#allocation5 + $0x40] sm:$0xff]
    %v70 = vld [vmem:[#allocation5 + $0x48] sm:$0xff]
    %v71 = vld [vmem:[#allocation5 + $0x50] sm:$0xff]
    %v72 = vld [vmem:[#allocation5 + $0x58] sm:$0xff]
    %v73 = vld [vmem:[#allocation5 + $0x60] sm:$0xff]
    %v74 = vld [vmem:[#allocation5 + $0x68] sm:$0xff]
    %v75 = vld [vmem:[#allocation5 + $0x70] sm:$0xff]
    %v76 = vld [vmem:[#allocation5 + $0x78] sm:$0xff]
    %v77 = vld [vmem:[#allocation7] sm:$0x3]
    %v78 = vpack.c.bf16 %v60, %v60
    %v80 = vperm.slane %v77, 0
    %v81 = vperm.slane %v77, 1
    %v100 = vunpack.c.l.b16 %v61
    %v101 = vunpack.c.h.b16 %v61
    %v102 = vunpack.c.l.b16 %v62
    %v103 = vunpack.c.h.b16 %v62
    %v104 = vunpack.c.l.b16 %v63
    %v105 = vunpack.c.h.b16 %v63
    %v106 = vunpack.c.l.b16 %v64
    %v107 = vunpack.c.h.b16 %v64
    %v108 = vunpack.c.l.b16 %v65
    %v109 = vunpack.c.h.b16 %v65
    %v110 = vunpack.c.l.b16 %v66
    %v111 = vunpack.c.h.b16 %v66
    %v112 = vunpack.c.l.b16 %v67
    %v113 = vunpack.c.h.b16 %v67
    %v114 = vunpack.c.l.b16 %v68
    %v115 = vunpack.c.h.b16 %v68
    %v116 = vunpack.c.l.b16 %v69
    %v117 = vunpack.c.h.b16 %v69
    %v118 = vunpack.c.l.b16 %v70
    %v119 = vunpack.c.h.b16 %v70
    %v120 = vunpack.c.l.b16 %v71
    %v121 = vunpack.c.h.b16 %v71
    %v122 = vunpack.c.l.b16 %v72
    %v123 = vunpack.c.h.b16 %v72
    %v124 = vunpack.c.l.b16 %v73
    %v125 = vunpack.c.h.b16 %v73
    %v126 = vunpack.c.l.b16 %v74
    %v127 = vunpack.c.h.b16 %v74
    %v128 = vunpack.c.l.b16 %v75
    %v129 = vunpack.c.h.b16 %v75
    %v130 = vunpack.c.l.b16 %v76
    %v131 = vunpack.c.h.b16 %v76
    %v132 = vpack.c.b16 %v102, %v100
    %v133 = vpack.c.b16 %v103, %v101
    %v134 = vpack.c.b16 %v106, %v104
    %v135 = vpack.c.b16 %v107, %v105
    %v136 = vpack.c.b16 %v110, %v108
    %v137 = vpack.c.b16 %v111, %v109
    %v138 = vpack.c.b16 %v114, %v112
    %v139 = vpack.c.b16 %v115, %v113
    %v140 = vpack.c.b16 %v118, %v116
    %v141 = vpack.c.b16 %v119, %v117
    %v142 = vpack.c.b16 %v122, %v120
    %v143 = vpack.c.b16 %v123, %v121
    %v144 = vpack.c.b16 %v126, %v124
    %v145 = vpack.c.b16 %v127, %v125
    %v146 = vpack.c.b16 %v130, %v128
    %v147 = vpack.c.b16 %v131, %v129
    %164 = vmatpush.bf16.msra.mxu0 %v146
    %165 = vmatpush.bf16.msra.mxu0 %v144
    %166 = vmatpush.bf16.msra.mxu0 %v142
    %167 = vmatpush.bf16.msra.mxu0 %v140
    %168 = vmatpush.bf16.msra.mxu0 %v138
    %169 = vmatpush.bf16.msra.mxu0 %v136
    %170 = vmatpush.bf16.msra.mxu0 %v134
    %171 = vmatpush.bf16.msra.mxu0 %v132
    %172 = vmatmul.bf16.gmra.mxu0 %v78
    %v173 = vpop.f32.mrf.mxu0
    %v174 = vadd.f32 %v80, %v173
    %v175 = vpop.f32.mrf.mxu0
    %176 = vdwg.mxu0
    %177 = vmatpush.bf16.msra.mxu0 %v147
    %178 = vmatpush.bf16.msra.mxu0 %v145
    %179 = vmatpush.bf16.msra.mxu0 %v143
    %180 = vmatpush.bf16.msra.mxu0 %v141
    %181 = vmatpush.bf16.msra.mxu0 %v139
    %182 = vmatpush.bf16.msra.mxu0 %v137
    %183 = vmatpush.bf16.msra.mxu0 %v135
    %184 = vmatpush.bf16.msra.mxu0 %v133
    %185 = vmatmul.bf16.gmra.mxu0 %v78
    %v186 = vpop.f32.mrf.mxu0
    %v187 = vadd.f32 %v81, %v186
    %v188 = vpop.f32.mrf.mxu0
    %189 = vdwg.mxu0
    %v190 = vmax.f32 %v174, 0.0
    %v191 = vxor.u32 %v187, 2147483648
    %v192 = vmul.f32 %v191, 1.442695
    %v193 = vpow.pop %v192
    %v194 = vadd.f32 %v193, 1.0
    %v195 = vrcp.pop %v194
    %v196 = vmul.f32 %v194, %v195
    %v197 = vsub.f32 1.0, %v196
    %v198 = vmul.f32 %v195, %v197
    %v199 = vadd.f32 %v195, %v198
    %vm200 = vweird.f32 %v194
    %vm201 = vweird.f32 %v195
    %vm202 = vmor %vm200, %vm201
    %v203 = vsel %vm202, %v195, %v199
    %v204 = vand.u32 2147483647, %v194
    %vm205 = vcmp.eq.f32.partialorder %v204, 8.507059e+37
    %v206 = vand.u32 %v194, 2147483648
    %v207 = vor.u32 1.1754944e-38, %v206
    %v208 = vsel %vm205, %v207, %v203
    %v209 = vmul.f32 1.0, %v208
    %v210 = vsub.f32 %v190, %v60
    %v211 = vmul.f32 %v209, %v210
    %v212 = vadd.f32 %v60, %v211
    %213 = vst [vmem:[#allocation8] sm:$0xff] %v212
    // Predicated region
    $region26: #{tpu_custom_call.1} parent=1 // pred_check
      _
    $region27: #{tpu_custom_call.1} parent=1 // pred_check_branch
      %215 = sbr.rel (0) target = $region29
    $region28: #{tpu_custom_call.1} parent=1 // pred_region
      %217 = vsyncadd [#allocation4], 96
      %s218 = sshll.u32 [#allocation8], 4
      %s219 = int_to_ptr.vmem [resolvable:$true] %s218
      %s220 = sshll.u32 %s3, 4
      %s221 = int_to_ptr.hbm [resolvable:$true] %s220
      %226 = dma.vmem_to_hbm [thread:$0]  %s219, 32, %s221, [#allocation4], 32, 32, 2
    $region29: #{tpu_custom_call.1} parent=1 // pred_fallthru
      _
    // Predicated region
    $region30: #{tpu_custom_call.1} parent=1 // pred_check
      _
    $region31: #{tpu_custom_call.1} parent=1 // pred_check_branch
      %228 = sbr.rel (0) target = $region33
    $region32: #{tpu_custom_call.1} parent=1 // pred_region
      %230 = dma.done [#allocation4], 128
    $region33: #{tpu_custom_call.1} parent=1 // pred_fallthru
      _
    %231 = vsyncpa [#allocation3], 1
    %232 = vsyncpa [#allocation6], 1
    %233 = vsyncpa [#allocation4], 1

</llo_original>
